<compile_context>
chip_gen: v7x
topology: tpu7x:2x2x1
jax: 0.10.0
libtpu: 0.0.40
codegen_flags: <defaults>
</compile_context>

<pallas_src>
import jax
import jax.numpy as jnp
from jax.experimental import pallas as pl
from jax.experimental.pallas import tpu as pltpu


def _round_up(n, m):
    return ((n + m - 1) // m) * m


def _cdiv(a, b):
    return -(-a // b)


def policy_kernel(dw_ref, db_ref, xt_ref, ot_ref):
    # dw_ref: VMEM (4, 1) f32  -- weight[1,:] - weight[0,:] as a sublane column
    # db_ref: SMEM (1,)   f32  -- bias[1] - bias[0]
    # xt_ref: VMEM (4, TB) f32 -- input tile, batch on the lane axis
    # ot_ref: VMEM (2, TB) f32 -- [p(class 0); p(class 1)]
    x = xt_ref[...]                                           # (4, TB)

    # Delta-logit: d = (w1 - w0) . x + (b1 - b0)
    # One VPU multiply on the full (4, TB) tile + size-4 sublane reduce (XLU).
    d = jnp.sum(x * dw_ref[...], axis=0, keepdims=True) + db_ref[0]   # (1, TB)

    # 2-class softmax as two numerically-stable sigmoids (pure elementwise).
    p1 = pl.reciprocal(1.0 + jnp.exp(-d))                     # sigma(d)
    p0 = pl.reciprocal(1.0 + jnp.exp(d))                      # sigma(-d)

    ot_ref[0:1, :] = p0.astype(ot_ref.dtype)
    ot_ref[1:2, :] = p1.astype(ot_ref.dtype)


def policy_forward(x, weight, bias, *, tb_max=131072):
    """softmax(x @ weight.T + bias, axis=1) with nn.Linear(4, 2) parameters.

    x: (B, 4); weight: (2, 4) in PyTorch (out, in) layout; bias: (2,).
    Returns (B, 2) float32 probabilities.
    """
    B = x.shape[0]

    # Batch tiling: pad the batch only up to a multiple of 128, then split it
    # into cdiv(b128, tb_max) nearly-equal 128-aligned tiles.  Per-step VMEM
    # footprint ~= 128*tb bytes ((4,tb) and (2,tb) both sublane-pad to 8 rows,
    # x2 for double buffering), so tb=128K keeps us at ~16 MiB/step, inside
    # the raised 32 MiB scoped limit on every generation (incl. v7x's 64 MiB
    # physical VMEM).
    b128 = _round_up(B, 128)
    nsteps = _cdiv(b128, tb_max)
    tb = _round_up(_cdiv(b128, nsteps), 128)
    b_pad = nsteps * tb

    x = x.astype(jnp.float32)
    # Layout plumbing: feature-major (4, B) so batch sits on the lane axis.
    # TODO(synk): if callers can hand over / consume feature-major activations
    # ((4,B) in, (2,B) out) these two wrapper transposes disappear entirely.
    xt = jnp.transpose(x)                                     # (4, B)
    if b_pad != B:
        xt = jnp.pad(xt, ((0, 0), (0, b_pad - B)))

    w = weight.astype(jnp.float32)
    b = bias.astype(jnp.float32)
    dw_col = (w[1, :] - w[0, :]).reshape(4, 1)                # (4, 1)
    db = (b[1] - b[0]).reshape(1)                             # (1,)

    out_t = pl.pallas_call(
        policy_kernel,
        out_shape=jax.ShapeDtypeStruct((2, b_pad), jnp.float32),
        grid=(nsteps,),
        in_specs=[
            pl.BlockSpec((4, 1), lambda i: (0, 0)),               # dw column (VMEM)
            pl.BlockSpec(memory_space=pltpu.MemorySpace.SMEM),    # db scalar
            pl.BlockSpec((4, tb), lambda i: (0, i)),              # x^T tile
        ],
        out_specs=pl.BlockSpec((2, tb), lambda i: (0, i)),
        compiler_params=pltpu.CompilerParams(
            dimension_semantics=("parallel",),
            vmem_limit_bytes=32 * 1024 * 1024),
    )(dw_col, db, xt)

    return out_t[:, :B].T                                     # (B, 2)


def reference_forward(x, weight, bias):
    logits = x @ weight.T + bias
    return jax.nn.softmax(logits, axis=1)


if __name__ == "__main__":
    key = jax.random.PRNGKey(0)
    kx, kw, kb = jax.random.split(key, 3)

    batch = 8
    in_features, out_features = 4, 2

    # Deterministic synthetic parameters (shapes from nn.Linear(4, 2)).
    x = jax.random.normal(kx, (batch, in_features), dtype=jnp.float32)
    weight = jax.random.normal(kw, (out_features, in_features), dtype=jnp.float32) * 0.5
    bias = jax.random.normal(kb, (out_features,), dtype=jnp.float32) * 0.1

    out = policy_forward(x, weight, bias)
    out = jax.block_until_ready(out)

    ref = reference_forward(x, weight, bias)
    assert out.shape == (batch, out_features)
    assert jnp.allclose(out, ref, atol=1e-5, rtol=1e-5), "mismatch vs reference"
    # softmax rows sum to 1
    assert jnp.allclose(jnp.sum(out, axis=1), jnp.ones((batch,)), atol=1e-5)

    print("KERNEL_OK")
</pallas_src>

<mosaic_0001>
module attributes {stable_mosaic.version = 11 : i64} {
  func.func @policy_kernel(%arg0: i32, %arg1: memref<4x1xf32, #tpu.memory_space<vmem>>, %arg2: memref<1xf32, #tpu.memory_space<smem>>, %arg3: memref<4x128xf32, #tpu.memory_space<vmem>>, %arg4: memref<2x128xf32, #tpu.memory_space<vmem>>) attributes {dimension_semantics = [#tpu.dimension_semantics<parallel>], iteration_bounds = array<i64: 1>, scalar_prefetch = 0 : i64, scratch_operands = 0 : i64, tpu.core_type = #tpu.core_type<tc>, window_params = [{pipeline_mode = #tpu.pipeline_mode<synchronous>, transform_indices = @transform_0, window_bounds = array<i64: 4, 1>}, {transform_indices = @transform_1, window_bounds = array<i64: 1>}, {transform_indices = @transform_2, window_bounds = array<i64: 4, 128>}, {transform_indices = @transform_3, window_bounds = array<i64: 2, 128>}]} {
    %c0 = arith.constant 0 : index
    %c0_0 = arith.constant 0 : index
    %0 = vector.load %arg3[%c0, %c0_0] : memref<4x128xf32, #tpu.memory_space<vmem>>, vector<4x128xf32>
    %c0_1 = arith.constant 0 : index
    %c0_2 = arith.constant 0 : index
    %1 = vector.load %arg1[%c0_1, %c0_2] : memref<4x1xf32, #tpu.memory_space<vmem>>, vector<4x1xf32>
    %2 = vector.broadcast %1 : vector<4x1xf32> to vector<4x128xf32>
    %3 = arith.mulf %0, %2 : vector<4x128xf32>
    %cst = arith.constant dense<0.000000e+00> : vector<128xf32>
    %4 = vector.multi_reduction <add>, %3, %cst [0] : vector<4x128xf32> to vector<128xf32>
    %5 = vector.shape_cast %4 : vector<128xf32> to vector<1x128xf32>
    %c0_3 = arith.constant 0 : index
    %6 = memref.load %arg2[%c0_3] : memref<1xf32, #tpu.memory_space<smem>>
    %7 = vector.broadcast %6 : f32 to vector<1x128xf32>
    %8 = arith.addf %5, %7 : vector<1x128xf32>
    %cst_4 = arith.constant 0.000000e+00 : f32
    %9 = vector.broadcast %cst_4 : f32 to vector<1x128xf32>
    %10 = arith.subf %9, %8 : vector<1x128xf32>
    %11 = math.exp %10 : vector<1x128xf32>
    %cst_5 = arith.constant 1.000000e+00 : f32
    %12 = vector.broadcast %cst_5 : f32 to vector<1x128xf32>
    %13 = arith.addf %12, %11 : vector<1x128xf32>
    %14 = tpu.reciprocal %13 : vector<1x128xf32> -> vector<1x128xf32>
    %15 = math.exp %8 : vector<1x128xf32>
    %cst_6 = arith.constant 1.000000e+00 : f32
    %16 = vector.broadcast %cst_6 : f32 to vector<1x128xf32>
    %17 = arith.addf %16, %15 : vector<1x128xf32>
    %18 = tpu.reciprocal %17 : vector<1x128xf32> -> vector<1x128xf32>
    %c0_7 = arith.constant 0 : index
    %c0_8 = arith.constant 0 : index
    %19 = vector.load %arg4[%c0_7, %c0_8] : memref<2x128xf32, #tpu.memory_space<vmem>>, vector<1x128xf32>
    tpu.vector_store %arg4[%c0_7, %c0_8], %18 {strides = array<i32>} : memref<2x128xf32, #tpu.memory_space<vmem>>, vector<1x128xf32>,
    %c1 = arith.constant 1 : index
    %c0_9 = arith.constant 0 : index
    %20 = vector.load %arg4[%c1, %c0_9] : memref<2x128xf32, #tpu.memory_space<vmem>>, vector<1x128xf32>
    tpu.vector_store %arg4[%c1, %c0_9], %14 {strides = array<i32>} : memref<2x128xf32, #tpu.memory_space<vmem>>, vector<1x128xf32>,
    return
  }
  func.func @transform_0(%arg0: i32) -> (i32, i32) {
    %c0_i32 = arith.constant 0 : i32
    %c0_i32_0 = arith.constant 0 : i32
    %c0_i32_1 = arith.constant 0 : i32
    return %c0_i32, %c0_i32_0 : i32, i32
  }
  func.func @transform_1(%arg0: i32) -> i32 {
    %c0_i32 = arith.constant 0 : i32
    %c0_i32_0 = arith.constant 0 : i32
    return %c0_i32 : i32
  }
  func.func @transform_2(%arg0: i32) -> (i32, i32) {
    %c0_i32 = arith.constant 0 : i32
    %c0_i32_0 = arith.constant 0 : i32
    return %c0_i32, %arg0 : i32, i32
  }
  func.func @transform_3(%arg0: i32) -> (i32, i32) {
    %c0_i32 = arith.constant 0 : i32
    %c0_i32_0 = arith.constant 0 : i32
    return %c0_i32, %arg0 : i32, i32
  }
}

</mosaic_0001>

<llo_original>
// kernel: tpu_custom_call.1
$region0: #{tpu_custom_call.1}
  #allocation0 [shape = 'u32[]', space=smem, size = 0x4, offset = 0x4, fixed_abs, tag = 'smem constant byte address 0x4 - core index']
  #allocation1 [shape = 'u32[144,128]{1,0:T(1,128)}', space=vmem, size = 0x12000, scoped, tag = 'internal scratch']
  #allocation2 [shape = 'f32[1]{0:T(128)S(6)}', space=smem, size = 0x200, scoped, tag = 'scoped memory for tpu_custom_call.1']
  %s0 = inlined_call_operand.vmem [shape: f32[4,1], index: 0, kind: input, shape index: {}]
  %s1 = inlined_call_operand.<no memory space> [shape: f32[1], index: 1, kind: input, shape index: {}]
  %s2 = inlined_call_operand.vmem [shape: f32[4,128], index: 2, kind: input, shape index: {}]
  %s3 = inlined_call_operand.hbm [shape: f32[2,128], index: 3, kind: output, shape index: {}]
  %s4 = sld [smem:[#allocation0]]
  $region22: #{tpu_custom_call.1} parent=0
    _
  %s6 = ssub.s32 1, %s4
  %s7 = scalar_select 0, %s6, %s4
  %8 = sst [smem:[#allocation2]] %s1
  $region1: #{tpu_custom_call.1} parent=0
    #allocation3 [shape = 'u8[1024]{0}', space=vmem, size = 0x400, scoped, tag = 'output window, operand 0, single buffered']
    #allocation4 [shape = 's32[1]{0}', space=sflag, size = 0x4, scoped, tag = 'scoped memory for tpu_custom_call.1']
    %9 = vsyncpa [#allocation4], 0
    // Predicated region
    $region2: #{tpu_custom_call.1} parent=1 // pred_check
      _
    $region3: #{tpu_custom_call.1} parent=1 // pred_check_branch
      %11 = sbr.rel (0) target = $region5
    $region4: #{tpu_custom_call.1} parent=1 // pred_region
      _
    $region5: #{tpu_custom_call.1} parent=1 // pred_fallthru
      _
    // Predicated region
    $region6: #{tpu_custom_call.1} parent=1 // pred_check
      _
    $region7: #{tpu_custom_call.1} parent=1 // pred_check_branch
      %13 = sbr.rel (0) target = $region9
    $region8: #{tpu_custom_call.1} parent=1 // pred_region
      _
    $region9: #{tpu_custom_call.1} parent=1 // pred_fallthru
      _
    // Predicated region
    $region10: #{tpu_custom_call.1} parent=1 // pred_check
      _
    $region11: #{tpu_custom_call.1} parent=1 // pred_check_branch
      %15 = sbr.rel (0) target = $region13
    $region12: #{tpu_custom_call.1} parent=1 // pred_region
      _
    $region13: #{tpu_custom_call.1} parent=1 // pred_fallthru
      _
    %v16 = vld [vmem:[%s2] sm:$0xf]
    %v17 = vld [vmem:[%s0] sm:$0xf]
    %19 = vset.pattern.permute.xlu0 0
    %20 = vperm.xlu0 %19, %v17
    %v21 = vpop.permute.xlu0 %20
    %v23 = vmul.f32 %v16, %v21
    %vm24 = vcmask 1043456
    %v25 = vsel %vm24, %v23, 0.0
    %v26 = vrot.slane %v25, 4
    %v27 = vadd.f32 %v25, %v26
    %v28 = vrot.slane %v27, 2
    %v29 = vadd.f32 %v27, %v28
    %v30 = vrot.slane %v29, 1
    %v31 = vadd.f32 %v29, %v30
    %s32 = sld [smem:[#allocation2]]
    %v33 = vstv %s32
    %v34 = vadd.f32 %v31, %v33
    %v35 = vsub.f32 0.0, %v34
    %v36 = vmul.f32 %v35, 1.442695
    %v37 = vpow.pop %v36
    %v38 = vadd.f32 %v37, 1.0
    %v39 = vrcp.pop %v38
    %v40 = vmul.f32 %v34, 1.442695
    %v41 = vpow.pop %v40
    %v42 = vadd.f32 %v41, 1.0
    %v43 = vrcp.pop %v42
    %44 = vst [vmem:[#allocation3] sm:$0x1] %v43
    %45 = vst [vmem:[#allocation3 + $0x1] sm:$0x1] %v39
    // Predicated region
    $region14: #{tpu_custom_call.1} parent=1 // pred_check
      _
    $region15: #{tpu_custom_call.1} parent=1 // pred_check_branch
      %47 = sbr.rel (0) target = $region17
    $region16: #{tpu_custom_call.1} parent=1 // pred_region
      %s49 = ssub.s32 32, 32
      %50 = vsyncadd [#allocation4], %s49
      %s52 = sshll.u32 [#allocation3], 4
      %s53 = int_to_ptr.vmem [resolvable:$true] %s52
      %55 = dma.vmem_to_hbm [thread:$0]  %s53, 32, %s3, [#allocation4]
    $region17: #{tpu_custom_call.1} parent=1 // pred_fallthru
      _
    // Predicated region
    $region18: #{tpu_custom_call.1} parent=1 // pred_check
      _
    $region19: #{tpu_custom_call.1} parent=1 // pred_check_branch
      %57 = sbr.rel (0) target = $region21
    $region20: #{tpu_custom_call.1} parent=1 // pred_region
      %58 = dma.done [#allocation4], 32
    $region21: #{tpu_custom_call.1} parent=1 // pred_fallthru
      _
    %59 = vsyncpa [#allocation4], 1

</llo_original>
